<compile_context>
chip_gen: v6e
topology: v6e:2x2x1
jax: 0.10.0
libtpu: 0.0.40
codegen_flags: <defaults>
</compile_context>

<pallas_src>
import functools
import math

import jax
import jax.numpy as jnp
from jax import lax
from jax.experimental import pallas as pl
from jax.experimental.pallas import tpu as pltpu

_EPS = 1e-8                      # matches F.cosine_similarity default eps
_VMEM_BUDGET = 40 * 1024 * 1024  # target per-step footprint for tile sizing
_VMEM_LIMIT = 48 * 1024 * 1024   # explicit scoped-VMEM limit (valid on v5e/v6e/v7x)


def _npair_kernel(wt_ref, w_ref, out_ref, *, n_valid, bn, pad_corr):
    # wt_ref : (bn, d_pad)   pre-normalized "j" (summation) columns, streamed over j
    # w_ref  : (d_pad, bn)   pre-normalized "i" columns, resident across the j loop
    # out_ref: (1, 1, bn)    per-i accumulator; becomes row losses at j == last
    i = pl.program_id(0)
    j = pl.program_id(1)

    @pl.when(j == 0)
    def _():
        out_ref[...] = jnp.zeros_like(out_ref)

    # cos_t[jj, ii] = cos(weight[:, j*bn + jj], weight[:, i*bn + ii])
    cos_t = jnp.dot(wt_ref[...], w_ref[...], preferred_element_type=jnp.float32)
    # Sublane reduce -> lane-dense (1, bn) partial sums, accumulated in place.
    out_ref[0] += jnp.sum(jnp.exp(cos_t - 1.0), axis=0, keepdims=True)

    @pl.when(j == pl.num_programs(1) - 1)
    def _():
        # Zero-padded j columns each contributed exactly exp(-1); remove them.
        acc = out_ref[0] - pad_corr
        # Zero the (at most one block of) padded i columns; runs once per i block.
        icol = lax.broadcasted_iota(jnp.int32, (1, bn), 1) + i * bn
        out_ref[0] = jnp.where(icol < n_valid, jnp.log(acc), 0.0)


def _sublane_multiple(dtype):
    return {1: 32, 2: 16, 4: 8}.get(jnp.dtype(dtype).itemsize, 8)


def npair_loss(weight, loss_weight=1.0, block_n=512, use_bf16_matmul=False):
    """Pallas implementation of NPairLoss.forward.  weight: (d, n) float array."""
    d, n = weight.shape
    op_dtype = jnp.bfloat16 if use_bf16_matmul else weight.dtype
    itemsize = jnp.dtype(op_dtype).itemsize

    sub = _sublane_multiple(op_dtype)
    d_pad = int(sub * pl.cdiv(d, sub))

    # ---- tile selection: largest lane-aligned bn under the VMEM budget ----
    n128 = int(128 * pl.cdiv(n, 128))
    bn = min(max(128, (int(block_n) // 128) * 128), n128)

    def footprint(b):
        operands = 2 * 2 * b * d_pad * itemsize   # double-buffered LHS + RHS tiles
        out = 2 * b * 4                           # resident f32 output block
        temps = 2 * b * b * 4                     # f32 cos + exp temporaries
        return operands + out + temps

    while bn > 128 and footprint(bn) > _VMEM_BUDGET:
        bn -= 128
    # Guarantee >= 2 i-blocks whenever n spans more than one 128-lane tile so
    # the "parallel" i axis can split across the two v7x TensorCores.
    if n > 128:
        bn = min(bn, 128 * ((n - 1) // 128))
    n_pad = int(bn * pl.cdiv(n, bn))
    gi = gj = n_pad // bn

    # ---- pre-normalize columns once in XLA (O(n*d), off the critical loop) ----
    w32 = jnp.pad(weight.astype(jnp.float32), ((0, d_pad - d), (0, n_pad - n)))
    inv = lax.rsqrt(jnp.maximum(jnp.sum(w32 * w32, axis=0, keepdims=True),
                                _EPS * _EPS))
    # NOTE: per-column clamp differs from torch's clamp on the *product* of norms
    # only for ~zero-norm columns.  Zero-padded columns remain exactly zero.
    w_n = (w32 * inv).astype(op_dtype)    # (d_pad, n_pad)
    wt_n = w_n.T                          # (n_pad, d_pad), cheap HBM-side transpose

    kernel = functools.partial(_npair_kernel, n_valid=n, bn=bn,
                               pad_corr=float((n_pad - n) * math.exp(-1.0)))

    cost = pl.CostEstimate(
        flops=int(2 * n_pad * n_pad * d_pad),
        transcendentals=int(n_pad * n_pad + n_pad),
        # LHS (wt_n) is re-streamed gi times; RHS read once per i block.
        bytes_accessed=int((gi + 1) * n_pad * d_pad * itemsize + gi * bn * 4),
    )

    per_row = pl.pallas_call(
        kernel,
        out_shape=jax.ShapeDtypeStruct((gi, 1, bn), jnp.float32),
        grid_spec=pltpu.PrefetchScalarGridSpec(
            num_scalar_prefetch=0,
            grid=(gi, gj),                                  # reduction axis j last
            in_specs=[
                # LHS rows = "j" block of columns (streamed along the inner axis).
                pl.BlockSpec((bn, d_pad), lambda i, j: (j, 0)),
                # RHS cols = "i" block of columns (held fixed across j).
                pl.BlockSpec((d_pad, bn), lambda i, j: (0, i)),
            ],
            out_specs=pl.BlockSpec((1, 1, bn), lambda i, j: (i, 0, 0)),
        ),
        compiler_params=pltpu.CompilerParams(
            dimension_semantics=("parallel", "arbitrary"),
            vmem_limit_bytes=_VMEM_LIMIT,
        ),
        cost_estimate=cost,
    )(wt_n, w_n)

    # Padded i rows were zeroed in-kernel; tiny final reduce stays in XLA.
    return loss_weight * jnp.sum(per_row) / n


def npair_loss_reference(weight, loss_weight=1.0):
    """Plain-JAX reference mirroring the PyTorch loop."""
    d, n = weight.shape
    w32 = weight.astype(jnp.float32)
    g = w32.T @ w32
    norms = jnp.sqrt(jnp.sum(w32 * w32, axis=0))
    cos = g / jnp.maximum(norms[:, None] * norms[None, :], _EPS)
    per_i = jnp.log(jnp.sum(jnp.exp(cos - 1.0), axis=1))
    return loss_weight * jnp.sum(per_i) / n


if __name__ == "__main__":
    key = jax.random.PRNGKey(0)
    k1, k2 = jax.random.split(key)

    # Small shape consistent with NPairLoss.forward: weight is (d, n).
    d, n = 32, 20
    loss_weight = 0.5
    weight = jax.random.normal(k1, (d, n), dtype=jnp.float32)

    out = jax.block_until_ready(npair_loss(weight, loss_weight))
    ref = npair_loss_reference(weight, loss_weight)
    assert jnp.allclose(out, ref, rtol=1e-4, atol=1e-4), (out, ref)

    # Multi-block grid (gi = gj = 2) + padded-column handling.
    d2, n2 = 48, 200
    weight2 = jax.random.normal(k2, (d2, n2), dtype=jnp.float32)
    out2 = jax.block_until_ready(npair_loss(weight2, 0.3, block_n=128))
    ref2 = npair_loss_reference(weight2, 0.3)
    assert jnp.allclose(out2, ref2, rtol=1e-4, atol=1e-4), (out2, ref2)

    # Optional bf16-MXU path (intentionally looser numerics, gated by a flag).
    out2_bf16 = jax.block_until_ready(
        npair_loss(weight2, 0.3, block_n=128, use_bf16_matmul=True))
    assert jnp.allclose(out2_bf16, ref2, rtol=5e-2, atol=5e-2), (out2_bf16, ref2)

    print("KERNEL_OK")
</pallas_src>

<mosaic_0001>
module attributes {stable_mosaic.version = 11 : i64} {
  func.func @_npair_kernel(%arg0: i32, %arg1: i32, %arg2: memref<128x32xf32, #tpu.memory_space<vmem>>, %arg3: memref<32x128xf32, #tpu.memory_space<vmem>>, %arg4: memref<1x1x128xf32, #tpu.memory_space<vmem>>) attributes {dimension_semantics = [#tpu.dimension_semantics<parallel>, #tpu.dimension_semantics<arbitrary>], iteration_bounds = array<i64: 1, 1>, scalar_prefetch = 0 : i64, scratch_operands = 0 : i64, tpu.core_type = #tpu.core_type<tc>, window_params = [{transform_indices = @transform_0, window_bounds = array<i64: 128, 32>}, {transform_indices = @transform_1, window_bounds = array<i64: 32, 128>}, {transform_indices = @transform_2, window_bounds = array<i64: 1, 1, 128>}]} {
    %c0_i32 = arith.constant 0 : i32
    %0 = arith.cmpi eq, %arg1, %c0_i32 : i32
    %1 = arith.extui %0 : i1 to i32
    %c0_i32_0 = arith.constant 0 : i32
    %2 = arith.cmpi ne, %1, %c0_i32_0 : i32
    scf.if %2 {
      %cst_14 = arith.constant 0.000000e+00 : f32
      %20 = vector.broadcast %cst_14 : f32 to vector<1x1x128xf32>
      %c0_15 = arith.constant 0 : index
      %c0_16 = arith.constant 0 : index
      %c0_17 = arith.constant 0 : index
      %21 = vector.load %arg4[%c0_15, %c0_16, %c0_17] : memref<1x1x128xf32, #tpu.memory_space<vmem>>, vector<1x1x128xf32>
      tpu.vector_store %arg4[%c0_15, %c0_16, %c0_17], %20 {strides = array<i32>} : memref<1x1x128xf32, #tpu.memory_space<vmem>>, vector<1x1x128xf32>,
    } else {
    }
    %c0 = arith.constant 0 : index
    %c0_1 = arith.constant 0 : index
    %3 = vector.load %arg2[%c0, %c0_1] : memref<128x32xf32, #tpu.memory_space<vmem>>, vector<128x32xf32>
    %c0_2 = arith.constant 0 : index
    %c0_3 = arith.constant 0 : index
    %4 = vector.load %arg3[%c0_2, %c0_3] : memref<32x128xf32, #tpu.memory_space<vmem>>, vector<32x128xf32>
    %cst = arith.constant dense<0.000000e+00> : vector<128x128xf32>
    %5 = tpu.matmul %3, %4, %cst {dimension_numbers = #tpu.dot_dimension_numbers<[1], [0], [0], [1], [0, 0, 1, 1], [], []>} : vector<128x32xf32>, vector<32x128xf32>, vector<128x128xf32> -> vector<128x128xf32>
    %c0_4 = arith.constant 0 : index
    %c0_5 = arith.constant 0 : index
    %c0_6 = arith.constant 0 : index
    %6 = vector.load %arg4[%c0_4, %c0_5, %c0_6] : memref<1x1x128xf32, #tpu.memory_space<vmem>>, vector<1x1x128xf32>
    %7 = vector.shape_cast %6 : vector<1x1x128xf32> to vector<1x128xf32>
    %cst_7 = arith.constant 1.000000e+00 : f32
    %8 = vector.broadcast %cst_7 : f32 to vector<128x128xf32>
    %9 = arith.subf %5, %8 : vector<128x128xf32>
    %10 = math.exp %9 : vector<128x128xf32>
    %cst_8 = arith.constant dense<0.000000e+00> : vector<128xf32>
    %11 = vector.multi_reduction <add>, %10, %cst_8 [0] : vector<128x128xf32> to vector<128xf32>
    %12 = vector.shape_cast %11 : vector<128xf32> to vector<1x128xf32>
    %13 = arith.addf %7, %12 : vector<1x128xf32>
    %c0_9 = arith.constant 0 : index
    %c0_10 = arith.constant 0 : index
    %c0_11 = arith.constant 0 : index
    %14 = vector.load %arg4[%c0_9, %c0_10, %c0_11] : memref<1x1x128xf32, #tpu.memory_space<vmem>>, vector<1x1x128xf32>
    %15 = vector.shape_cast %14 : vector<1x1x128xf32> to vector<1x128xf32>
    %16 = vector.shape_cast %13 : vector<1x128xf32> to vector<1x1x128xf32>
    tpu.vector_store %arg4[%c0_9, %c0_10, %c0_11], %16 {strides = array<i32>} : memref<1x1x128xf32, #tpu.memory_space<vmem>>, vector<1x1x128xf32>,
    %c0_i32_12 = arith.constant 0 : i32
    %17 = arith.cmpi eq, %arg1, %c0_i32_12 : i32
    %18 = arith.extui %17 : i1 to i32
    %c0_i32_13 = arith.constant 0 : i32
    %19 = arith.cmpi ne, %18, %c0_i32_13 : i32
    scf.if %19 {
      %c0_14 = arith.constant 0 : index
      %c0_15 = arith.constant 0 : index
      %c0_16 = arith.constant 0 : index
      %20 = vector.load %arg4[%c0_14, %c0_15, %c0_16] : memref<1x1x128xf32, #tpu.memory_space<vmem>>, vector<1x1x128xf32>
      %21 = vector.shape_cast %20 : vector<1x1x128xf32> to vector<1x128xf32>
      %cst_17 = arith.constant 39.7309799 : f32
      %22 = vector.broadcast %cst_17 : f32 to vector<1x128xf32>
      %23 = arith.subf %21, %22 : vector<1x128xf32>
      %24 = tpu.iota {dimensions = array<i32: 1>} : vector<1x128xi32>
      %c128_i32 = arith.constant 128 : i32
      %25 = arith.muli %arg0, %c128_i32 : i32
      %26 = vector.broadcast %25 : i32 to vector<1x128xi32>
      %27 = arith.addi %24, %26 : vector<1x128xi32>
      %c20_i32 = arith.constant 20 : i32
      %28 = vector.broadcast %c20_i32 : i32 to vector<1x128xi32>
      %29 = arith.cmpi slt, %27, %28 : vector<1x128xi32>
      %30 = math.log %23 : vector<1x128xf32>
      %cst_18 = arith.constant 0.000000e+00 : f32
      %31 = vector.broadcast %cst_18 : f32 to vector<1x128xf32>
      %32 = arith.select %29, %30, %31 : vector<1x128xi1>, vector<1x128xf32>
      %c0_19 = arith.constant 0 : index
      %c0_20 = arith.constant 0 : index
      %c0_21 = arith.constant 0 : index
      %33 = vector.load %arg4[%c0_19, %c0_20, %c0_21] : memref<1x1x128xf32, #tpu.memory_space<vmem>>, vector<1x1x128xf32>
      %34 = vector.shape_cast %33 : vector<1x1x128xf32> to vector<1x128xf32>
      %35 = vector.shape_cast %32 : vector<1x128xf32> to vector<1x1x128xf32>
      tpu.vector_store %arg4[%c0_19, %c0_20, %c0_21], %35 {strides = array<i32>} : memref<1x1x128xf32, #tpu.memory_space<vmem>>, vector<1x1x128xf32>,
    } else {
    }
    return
  }
  func.func @transform_0(%arg0: i32, %arg1: i32) -> (i32, i32) {
    %c0_i32 = arith.constant 0 : i32
    %c0_i32_0 = arith.constant 0 : i32
    return %arg1, %c0_i32 : i32, i32
  }
  func.func @transform_1(%arg0: i32, %arg1: i32) -> (i32, i32) {
    %c0_i32 = arith.constant 0 : i32
    %c0_i32_0 = arith.constant 0 : i32
    return %c0_i32, %arg0 : i32, i32
  }
  func.func @transform_2(%arg0: i32, %arg1: i32) -> (i32, i32, i32) {
    %c0_i32 = arith.constant 0 : i32
    %c0_i32_0 = arith.constant 0 : i32
    %c0_i32_1 = arith.constant 0 : i32
    return %arg0, %c0_i32, %c0_i32_0 : i32, i32, i32
  }
}

</mosaic_0001>

<llo_original>
// kernel: tpu_custom_call.1
$region0: #{tpu_custom_call.1}
  #allocation0 [shape = 'u32[]', space=smem, size = 0x4, offset = 0x4, fixed_abs, tag = 'smem constant byte address 0x4 - core index']
  #allocation1 [shape = 'u32[144,128]{1,0:T(1,128)}', space=vmem, size = 0x12000, scoped, tag = 'internal scratch']
  %s0 = inlined_call_operand.vmem [shape: f32[128,32], index: 0, kind: input, shape index: {}]
  %s1 = inlined_call_operand.vmem [shape: f32[32,128], index: 1, kind: input, shape index: {}]
  %s2 = inlined_call_operand.hbm [shape: f32[1,1,128], index: 2, kind: output, shape index: {}]
  %s3 = sld [smem:[#allocation0]]
  $region26: #{tpu_custom_call.1} parent=0
    _
  %s5 = ssub.s32 1, %s3
  %s6 = scalar_select 0, %s5, %s3
  $region1: #{tpu_custom_call.1} parent=0
    #allocation2 [shape = 'u8[512]{0}', space=vmem, size = 0x400, scoped, tag = 'output window, operand 0, single buffered']
    #allocation3 [shape = 's32[1]{0}', space=sflag, size = 0x4, scoped, tag = 'scoped memory for tpu_custom_call.1']
    %7 = vsyncpa [#allocation3], 0
    // Predicated region
    $region2: #{tpu_custom_call.1} parent=1 // pred_check
      _
    $region3: #{tpu_custom_call.1} parent=1 // pred_check_branch
      %9 = sbr.rel (0) target = $region5
    $region4: #{tpu_custom_call.1} parent=1 // pred_region
      _
    $region5: #{tpu_custom_call.1} parent=1 // pred_fallthru
      _
    // Predicated region
    $region6: #{tpu_custom_call.1} parent=1 // pred_check
      _
    $region7: #{tpu_custom_call.1} parent=1 // pred_check_branch
      %11 = sbr.rel (0) target = $region9
    $region8: #{tpu_custom_call.1} parent=1 // pred_region
      _
    $region9: #{tpu_custom_call.1} parent=1 // pred_fallthru
      _
    %p12 = scmp.eq.s32.totalorder 0, 0
    // Predicated region
    $region10: #{tpu_custom_call.1} parent=1 // pred_check
      %p13 = pneg %p12
    $region11: #{tpu_custom_call.1} parent=1 // pred_check_branch
      %15 = sbr.rel (%p13) target = $region13
    $region12: #{tpu_custom_call.1} parent=1 // pred_region
      %16 = vst [vmem:[#allocation2] sm:$0x1] 0.0
    $region13: #{tpu_custom_call.1} parent=1 // pred_fallthru
      _
    %v17 = vld [vmem:[%s0] sm:$0xff]
    %v18 = vld [vmem:[%s0 + $0x8] sm:$0xff]
    %v19 = vld [vmem:[%s0 + $0x10] sm:$0xff]
    %v20 = vld [vmem:[%s0 + $0x18] sm:$0xff]
    %v21 = vld [vmem:[%s0 + $0x20] sm:$0xff]
    %v22 = vld [vmem:[%s0 + $0x28] sm:$0xff]
    %v23 = vld [vmem:[%s0 + $0x30] sm:$0xff]
    %v24 = vld [vmem:[%s0 + $0x38] sm:$0xff]
    %v25 = vld [vmem:[%s0 + $0x40] sm:$0xff]
    %v26 = vld [vmem:[%s0 + $0x48] sm:$0xff]
    %v27 = vld [vmem:[%s0 + $0x50] sm:$0xff]
    %v28 = vld [vmem:[%s0 + $0x58] sm:$0xff]
    %v29 = vld [vmem:[%s0 + $0x60] sm:$0xff]
    %v30 = vld [vmem:[%s0 + $0x68] sm:$0xff]
    %v31 = vld [vmem:[%s0 + $0x70] sm:$0xff]
    %v32 = vld [vmem:[%s0 + $0x78] sm:$0xff]
    %v33 = vld [vmem:[%s1] sm:$0xff]
    %v34 = vld [vmem:[%s1 + $0x8] sm:$0xff]
    %v35 = vld [vmem:[%s1 + $0x10] sm:$0xff]
    %v36 = vld [vmem:[%s1 + $0x18] sm:$0xff]
    %vm37 = vcmask 261120
    %v39 = vsel %vm37, %v17, 0
    %v42 = vsel %vm37, %v18, 0
    %v45 = vsel %vm37, %v19, 0
    %v48 = vsel %vm37, %v20, 0
    %v51 = vsel %vm37, %v21, 0
    %v54 = vsel %vm37, %v22, 0
    %v57 = vsel %vm37, %v23, 0
    %v60 = vsel %vm37, %v24, 0
    %v63 = vsel %vm37, %v25, 0
    %v66 = vsel %vm37, %v26, 0
    %v69 = vsel %vm37, %v27, 0
    %v72 = vsel %vm37, %v28, 0
    %v75 = vsel %vm37, %v29, 0
    %v78 = vsel %vm37, %v30, 0
    %v81 = vsel %vm37, %v31, 0
    %v84 = vsel %vm37, %v32, 0
    %86 = vmatprep.subr.mxu0 0.0
    %87 = vmatpush1.msra.mxu0 0.0
    %88 = vmatprep.subr.mxu0 0.0
    %89 = vmatpush1.msra.mxu0 0.0
    %90 = vmatprep.subr.mxu0 0.0
    %91 = vmatpush1.msra.mxu0 0.0
    %92 = vmatprep.subr.mxu0 0.0
    %93 = vmatpush1.msra.mxu0 0.0
    %94 = vmatprep.subr.mxu0 0.0
    %95 = vmatpush1.msra.mxu0 0.0
    %96 = vmatprep.subr.mxu0 0.0
    %97 = vmatpush1.msra.mxu0 0.0
    %98 = vmatprep.subr.mxu0 0.0
    %99 = vmatpush1.msra.mxu0 0.0
    %100 = vmatprep.subr.mxu0 0.0
    %101 = vmatpush1.msra.mxu0 0.0
    %102 = vmatprep.subr.mxu0 0.0
    %103 = vmatpush1.msra.mxu0 0.0
    %104 = vmatprep.subr.mxu0 0.0
    %105 = vmatpush1.msra.mxu0 0.0
    %106 = vmatprep.subr.mxu0 0.0
    %107 = vmatpush1.msra.mxu0 0.0
    %108 = vmatprep.subr.mxu0 0.0
    %109 = vmatpush1.msra.mxu0 0.0
    %110 = vmatprep.subr.mxu0 0.0
    %111 = vmatpush1.msra.mxu0 %v36
    %112 = vmatprep.subr.mxu0 0.0
    %113 = vmatpush1.msra.mxu0 %v35
    %114 = vmatprep.subr.mxu0 0.0
    %115 = vmatpush1.msra.mxu0 %v34
    %116 = vmatprep.subr.mxu0 0.0
    %117 = vmatpush1.msra.mxu0 %v33
    %118 = vmatprep.subr.mxu0 0.0
    %119 = vmatpush2.msra.mxu0 0.0
    %120 = vmatprep.subr.mxu0 0.0
    %121 = vmatpush2.msra.mxu0 0.0
    %122 = vmatprep.subr.mxu0 0.0
    %123 = vmatpush2.msra.mxu0 0.0
    %124 = vmatprep.subr.mxu0 0.0
    %125 = vmatpush2.msra.mxu0 0.0
    %126 = vmatprep.subr.mxu0 0.0
    %127 = vmatpush2.msra.mxu0 0.0
    %128 = vmatprep.subr.mxu0 0.0
    %129 = vmatpush2.msra.mxu0 0.0
    %130 = vmatprep.subr.mxu0 0.0
    %131 = vmatpush2.msra.mxu0 0.0
    %132 = vmatprep.subr.mxu0 0.0
    %133 = vmatpush2.msra.mxu0 0.0
    %134 = vmatprep.subr.mxu0 0.0
    %135 = vmatpush2.msra.mxu0 0.0
    %136 = vmatprep.subr.mxu0 0.0
    %137 = vmatpush2.msra.mxu0 0.0
    %138 = vmatprep.subr.mxu0 0.0
    %139 = vmatpush2.msra.mxu0 0.0
    %140 = vmatprep.subr.mxu0 0.0
    %141 = vmatpush2.msra.mxu0 0.0
    %142 = vmatprep.subr.mxu0 0.0
    %143 = vmatpush2.msra.mxu0 0.0
    %144 = vmatprep.subr.mxu0 0.0
    %145 = vmatpush2.msra.mxu0 0.0
    %146 = vmatprep.subr.mxu0 0.0
    %147 = vmatpush2.msra.mxu0 0.0
    %148 = vmatprep.subr.mxu0 0.0
    %149 = vmatpush2.msra.mxu0 0.0
    %150 = vmatprep.mubr.f32.mxu0 0.0
    %151 = vmatmul.mubr.f32.gmra.mxu0 %v39
    %v152 = vpop.f32.mrf.mxu0
    %v153 = vadd.f32 0.0, %v152
    %v154 = vpop.f32.mrf.mxu0
    %155 = vmatprep.mubr.f32.mxu0 0.0
    %156 = vmatmul.mubr.f32.gmra.mxu0 %v42
    %v157 = vpop.f32.mrf.mxu0
    %v158 = vadd.f32 0.0, %v157
    %v159 = vpop.f32.mrf.mxu0
    %160 = vmatprep.mubr.f32.mxu0 0.0
    %161 = vmatmul.mubr.f32.gmra.mxu0 %v45
    %v162 = vpop.f32.mrf.mxu0
    %v163 = vadd.f32 0.0, %v162
    %v164 = vpop.f32.mrf.mxu0
    %165 = vmatprep.mubr.f32.mxu0 0.0
    %166 = vmatmul.mubr.f32.gmra.mxu0 %v48
    %v167 = vpop.f32.mrf.mxu0
    %v168 = vadd.f32 0.0, %v167
    %v169 = vpop.f32.mrf.mxu0
    %170 = vmatprep.mubr.f32.mxu0 0.0
    %171 = vmatmul.mubr.f32.gmra.mxu0 %v51
    %v172 = vpop.f32.mrf.mxu0
    %v173 = vadd.f32 0.0, %v172
    %v174 = vpop.f32.mrf.mxu0
    %175 = vmatprep.mubr.f32.mxu0 0.0
    %176 = vmatmul.mubr.f32.gmra.mxu0 %v54
    %v177 = vpop.f32.mrf.mxu0
    %v178 = vadd.f32 0.0, %v177
    %v179 = vpop.f32.mrf.mxu0
    %180 = vmatprep.mubr.f32.mxu0 0.0
    %181 = vmatmul.mubr.f32.gmra.mxu0 %v57
    %v182 = vpop.f32.mrf.mxu0
    %v183 = vadd.f32 0.0, %v182
    %v184 = vpop.f32.mrf.mxu0
    %185 = vmatprep.mubr.f32.mxu0 0.0
    %186 = vmatmul.mubr.f32.gmra.mxu0 %v60
    %v187 = vpop.f32.mrf.mxu0
    %v188 = vadd.f32 0.0, %v187
    %v189 = vpop.f32.mrf.mxu0
    %190 = vmatprep.mubr.f32.mxu0 0.0
    %191 = vmatmul.mubr.f32.gmra.mxu0 %v63
    %v192 = vpop.f32.mrf.mxu0
    %v193 = vadd.f32 0.0, %v192
    %v194 = vpop.f32.mrf.mxu0
    %195 = vmatprep.mubr.f32.mxu0 0.0
    %196 = vmatmul.mubr.f32.gmra.mxu0 %v66
    %v197 = vpop.f32.mrf.mxu0
    %v198 = vadd.f32 0.0, %v197
    %v199 = vpop.f32.mrf.mxu0
    %200 = vmatprep.mubr.f32.mxu0 0.0
    %201 = vmatmul.mubr.f32.gmra.mxu0 %v69
    %v202 = vpop.f32.mrf.mxu0
    %v203 = vadd.f32 0.0, %v202
    %v204 = vpop.f32.mrf.mxu0
    %205 = vmatprep.mubr.f32.mxu0 0.0
    %206 = vmatmul.mubr.f32.gmra.mxu0 %v72
    %v207 = vpop.f32.mrf.mxu0
    %v208 = vadd.f32 0.0, %v207
    %v209 = vpop.f32.mrf.mxu0
    %210 = vmatprep.mubr.f32.mxu0 0.0
    %211 = vmatmul.mubr.f32.gmra.mxu0 %v75
    %v212 = vpop.f32.mrf.mxu0
    %v213 = vadd.f32 0.0, %v212
    %v214 = vpop.f32.mrf.mxu0
    %215 = vmatprep.mubr.f32.mxu0 0.0
    %216 = vmatmul.mubr.f32.gmra.mxu0 %v78
    %v217 = vpop.f32.mrf.mxu0
    %v218 = vadd.f32 0.0, %v217
    %v219 = vpop.f32.mrf.mxu0
    %220 = vmatprep.mubr.f32.mxu0 0.0
    %221 = vmatmul.mubr.f32.gmra.mxu0 %v81
    %v222 = vpop.f32.mrf.mxu0
    %v223 = vadd.f32 0.0, %v222
    %v224 = vpop.f32.mrf.mxu0
    %225 = vmatprep.mubr.f32.mxu0 0.0
    %226 = vmatmul.mubr.f32.gmra.mxu0 %v84
    %v227 = vpop.f32.mrf.mxu0
    %v228 = vadd.f32 0.0, %v227
    %v229 = vpop.f32.mrf.mxu0
    %230 = vdwg.mxu0
    %v231 = vld [vmem:[#allocation2] sm:$0x1]
    %v232 = vsub.f32 %v153, 1.0
    %v233 = vsub.f32 %v158, 1.0
    %v234 = vsub.f32 %v163, 1.0
    %v235 = vsub.f32 %v168, 1.0
    %v236 = vsub.f32 %v173, 1.0
    %v237 = vsub.f32 %v178, 1.0
    %v238 = vsub.f32 %v183, 1.0
    %v239 = vsub.f32 %v188, 1.0
    %v240 = vsub.f32 %v193, 1.0
    %v241 = vsub.f32 %v198, 1.0
    %v242 = vsub.f32 %v203, 1.0
    %v243 = vsub.f32 %v208, 1.0
    %v244 = vsub.f32 %v213, 1.0
    %v245 = vsub.f32 %v218, 1.0
    %v246 = vsub.f32 %v223, 1.0
    %v247 = vsub.f32 %v228, 1.0
    %v248 = vmul.f32 %v232, 1.442695
    %v249 = vpow.pop %v248
    %v250 = vmul.f32 %v233, 1.442695
    %v251 = vpow.pop %v250
    %v252 = vmul.f32 %v234, 1.442695
    %v253 = vpow.pop %v252
    %v254 = vmul.f32 %v235, 1.442695
    %v255 = vpow.pop %v254
    %v256 = vmul.f32 %v236, 1.442695
    %v257 = vpow.pop %v256
    %v258 = vmul.f32 %v237, 1.442695
    %v259 = vpow.pop %v258
    %v260 = vmul.f32 %v238, 1.442695
    %v261 = vpow.pop %v260
    %v262 = vmul.f32 %v239, 1.442695
    %v263 = vpow.pop %v262
    %v264 = vmul.f32 %v240, 1.442695
    %v265 = vpow.pop %v264
    %v266 = vmul.f32 %v241, 1.442695
    %v267 = vpow.pop %v266
    %v268 = vmul.f32 %v242, 1.442695
    %v269 = vpow.pop %v268
    %v270 = vmul.f32 %v243, 1.442695
    %v271 = vpow.pop %v270
    %v272 = vmul.f32 %v244, 1.442695
    %v273 = vpow.pop %v272
    %v274 = vmul.f32 %v245, 1.442695
    %v275 = vpow.pop %v274
    %v276 = vmul.f32 %v246, 1.442695
    %v277 = vpow.pop %v276
    %v278 = vmul.f32 %v247, 1.442695
    %v279 = vpow.pop %v278
    %v280 = vadd.f32 %v249, %v251
    %v281 = vadd.f32 %v280, %v253
    %v282 = vadd.f32 %v281, %v255
    %v283 = vadd.f32 %v282, %v257
    %v284 = vadd.f32 %v283, %v259
    %v285 = vadd.f32 %v284, %v261
    %v286 = vadd.f32 %v285, %v263
    %v287 = vadd.f32 %v286, %v265
    %v288 = vadd.f32 %v287, %v267
    %v289 = vadd.f32 %v288, %v269
    %v290 = vadd.f32 %v289, %v271
    %v291 = vadd.f32 %v290, %v273
    %v292 = vadd.f32 %v291, %v275
    %v293 = vadd.f32 %v292, %v277
    %v294 = vadd.f32 %v293, %v279
    %v295 = vrot.slane %v294, 4
    %v296 = vadd.f32 %v294, %v295
    %v297 = vrot.slane %v296, 2
    %v298 = vadd.f32 %v296, %v297
    %v299 = vrot.slane %v298, 1
    %v300 = vadd.f32 %v298, %v299
    %v301 = vadd.f32 %v231, %v300
    %302 = vst [vmem:[#allocation2] sm:$0x1] %v301
    // Predicated region
    $region14: #{tpu_custom_call.1} parent=1 // pred_check
      %p303 = pneg %p12
    $region15: #{tpu_custom_call.1} parent=1 // pred_check_branch
      %305 = sbr.rel (%p303) target = $region17
    $region16: #{tpu_custom_call.1} parent=1 // pred_region
      %v306 = vld [vmem:[#allocation2] sm:$0x1]
      %v307 = vsub.f32 %v306, 39.73098
      %v308 = vlaneseq
      %v309 = vand.u32 %v308, 127
      %s310 = smul.u32 0, 128
      %v311 = vstv %s310
      %v312 = vadd.s32 %v309, %v311
      %vm313 = vcmp.lt.s32.totalorder %v312, 20
      %v314 = vlog2.pop %v307
      %v315 = vmul.f32 %v314, 0.6931472
      %v316 = vsel %vm313, %v315, 0.0
      %317 = vst [vmem:[#allocation2] sm:$0x1] %v316
    $region17: #{tpu_custom_call.1} parent=1 // pred_fallthru
      _
    // Predicated region
    $region18: #{tpu_custom_call.1} parent=1 // pred_check
      _
    $region19: #{tpu_custom_call.1} parent=1 // pred_check_branch
      %319 = sbr.rel (0) target = $region21
    $region20: #{tpu_custom_call.1} parent=1 // pred_region
      %s321 = ssub.s32 16, 16
      %322 = vsyncadd [#allocation3], %s321
      %s324 = sshll.u32 [#allocation2], 4
      %s325 = int_to_ptr.vmem [resolvable:$true] %s324
      %327 = dma.vmem_to_hbm [thread:$0]  %s325, 16, %s2, [#allocation3]
    $region21: #{tpu_custom_call.1} parent=1 // pred_fallthru
      _
    // Predicated region
    $region22: #{tpu_custom_call.1} parent=1 // pred_check
      _
    $region23: #{tpu_custom_call.1} parent=1 // pred_check_branch
      %329 = sbr.rel (0) target = $region25
    $region24: #{tpu_custom_call.1} parent=1 // pred_region
      %330 = dma.done [#allocation3], 16
    $region25: #{tpu_custom_call.1} parent=1 // pred_fallthru
      _
    %331 = vsyncpa [#allocation3], 1

</llo_original>
